<compile_context>
chip_gen: v7x
topology: tpu7x:2x2x1
jax: 0.10.0
libtpu: 0.0.40
codegen_flags: <defaults>
</compile_context>

<pallas_src>
import jax
import jax.numpy as jnp
from jax.experimental import pallas as pl
from jax.experimental.pallas import tpu as pltpu

INPUT_SIZE = 28 * 28   # 784
HIDDEN_SIZE = 128
LATENT_SIZE = 8
OUT_PAD = 128          # latent dim zero-padded to a full lane group for stores


def _round_up(n, m):
    return ((n + m - 1) // m) * m


def encoder_kernel(x_ref, w1_ref, b1_ref, w2_ref, b2_ref, o_ref):
    # Layer 1: [bm, 784] @ [784, 128] on the MXU, f32 accumulation.
    h = jnp.dot(x_ref[...], w1_ref[...], preferred_element_type=jnp.float32)
    # Bias + ReLU in f32 on the VPU (works on all of v5e/v6e/v7x).
    h = jnp.maximum(h + b1_ref[...], 0.0)
    # Layer 2: [bm, 128] @ [128, 128] (latent zero-padded to 128 lanes so the
    # writeback is a full-lane store).  Cast h to the weight storage dtype so
    # bf16 weights feed the MXU natively instead of forcing an f32 matmul.
    h = h.astype(w2_ref.dtype)
    y = jnp.dot(h, w2_ref[...], preferred_element_type=jnp.float32)
    o_ref[...] = (y + b2_ref[...]).astype(o_ref.dtype)


def encoder_forward(x, w1, b1, w2, b2, *, block_m=1024,
                    storage_dtype=jnp.bfloat16):
    batch, in_features = x.shape
    assert in_features == INPUT_SIZE
    assert w1.shape == (INPUT_SIZE, HIDDEN_SIZE)
    assert w2.shape == (HIDDEN_SIZE, LATENT_SIZE)

    # HBM-heavy operands in the (possibly narrower) storage dtype; biases and
    # all post-matmul elementwise math stay f32.
    x_s = x.astype(storage_dtype)
    w1_s = w1.astype(storage_dtype)
    w2_p = (jnp.zeros((HIDDEN_SIZE, OUT_PAD), storage_dtype)
            .at[:, :LATENT_SIZE].set(w2.astype(storage_dtype)))
    b1_f = b1.reshape(1, HIDDEN_SIZE).astype(jnp.float32)
    b2_p = (jnp.zeros((1, OUT_PAD), jnp.float32)
            .at[:, :LATENT_SIZE].set(b2.reshape(1, LATENT_SIZE).astype(jnp.float32)))

    # Batch tile: large enough to amortize the ~0.35us/step pipeline overhead
    # (mem-bound roofline), but split into >=2 grid steps when batch allows so
    # the "parallel" axis can shard across v7x's two TensorCores.  Multiple of
    # 16 keeps bf16 sublane packing aligned (also fine for f32).
    bm = min(block_m, max(16, _round_up(pl.cdiv(batch, 2), 16)))
    grid = (pl.cdiv(batch, bm),)

    # Per-step VMEM estimate (lane-padded: 784 -> 896 lanes for x).
    s_item = jnp.dtype(storage_dtype).itemsize
    vmem_bytes = (
        2 * bm * _round_up(INPUT_SIZE, 128) * s_item        # x double buffer
        + INPUT_SIZE * HIDDEN_SIZE * s_item                  # w1 (resident)
        + HIDDEN_SIZE * OUT_PAD * s_item                     # w2 (resident)
        + 8 * (HIDDEN_SIZE + OUT_PAD) * 4                    # biases (resident)
        + 2 * bm * OUT_PAD * 4                               # output double buffer
        + bm * HIDDEN_SIZE * 4                               # h intermediate
    )
    compiler_kwargs = {"dimension_semantics": ("parallel",)}
    # Only raise the scoped-VMEM limit if we would exceed v5e's 16 MiB default
    # (with headroom); cap at 64 MiB so it stays legal on v7x.
    if vmem_bytes > 12 * 1024 * 1024:
        compiler_kwargs["vmem_limit_bytes"] = min(
            _round_up(int(vmem_bytes * 4 // 3), 1 << 20), 64 * 1024 * 1024)

    flops = 2 * batch * (INPUT_SIZE * HIDDEN_SIZE + HIDDEN_SIZE * OUT_PAD)
    bytes_accessed = (
        batch * INPUT_SIZE * s_item
        + INPUT_SIZE * HIDDEN_SIZE * s_item
        + HIDDEN_SIZE * OUT_PAD * s_item
        + (HIDDEN_SIZE + OUT_PAD) * 4
        + batch * OUT_PAD * 4
    )

    out_padded = pl.pallas_call(
        encoder_kernel,
        out_shape=jax.ShapeDtypeStruct((batch, OUT_PAD), jnp.float32),
        grid=grid,
        in_specs=[
            # x: tiled along batch, full (784-wide) feature width.
            pl.BlockSpec((bm, INPUT_SIZE), lambda i: (i, 0)),
            # Weights / biases: same block every step -> stay VMEM-resident.
            pl.BlockSpec((INPUT_SIZE, HIDDEN_SIZE), lambda i: (0, 0)),
            pl.BlockSpec((1, HIDDEN_SIZE), lambda i: (0, 0)),
            pl.BlockSpec((HIDDEN_SIZE, OUT_PAD), lambda i: (0, 0)),
            pl.BlockSpec((1, OUT_PAD), lambda i: (0, 0)),
        ],
        out_specs=pl.BlockSpec((bm, OUT_PAD), lambda i: (i, 0)),
        compiler_params=pltpu.CompilerParams(**compiler_kwargs),
        cost_estimate=pl.CostEstimate(
            flops=int(flops), transcendentals=0,
            bytes_accessed=int(bytes_accessed)),
    )(x_s, w1_s, b1_f, w2_p, b2_p)

    # Drop the zero-padded lanes (cheap XLA slice in the wrapper).
    return out_padded[:, :LATENT_SIZE]


def init_params(key):
    """Deterministic init mimicking PyTorch nn.Linear: U(-1/sqrt(fan_in), +)."""
    k1, k2, k3, k4 = jax.random.split(key, 4)
    bound1 = 1.0 / jnp.sqrt(INPUT_SIZE)
    bound2 = 1.0 / jnp.sqrt(HIDDEN_SIZE)
    w1 = jax.random.uniform(
        k1, (INPUT_SIZE, HIDDEN_SIZE), jnp.float32, -bound1, bound1)
    b1 = jax.random.uniform(k2, (1, HIDDEN_SIZE), jnp.float32, -bound1, bound1)
    w2 = jax.random.uniform(
        k3, (HIDDEN_SIZE, LATENT_SIZE), jnp.float32, -bound2, bound2)
    b2 = jax.random.uniform(k4, (1, LATENT_SIZE), jnp.float32, -bound2, bound2)
    return w1, b1, w2, b2


def encoder_reference(x, w1, b1, w2, b2):
    h = jnp.maximum(x @ w1 + b1, 0.0)
    return h @ w2 + b2


if __name__ == "__main__":
    key = jax.random.PRNGKey(0)
    k_params, k_x, k_x2, k_x3 = jax.random.split(key, 4)
    w1, b1, w2, b2 = init_params(k_params)

    # 1) Small smoke test with f32 storage: close to nn.Linear f32 numerics.
    x = jax.random.normal(k_x, (2, INPUT_SIZE), jnp.float32)
    out = jax.block_until_ready(
        encoder_forward(x, w1, b1, w2, b2, storage_dtype=jnp.float32))
    ref = encoder_reference(x, w1, b1, w2, b2)
    assert out.shape == (2, LATENT_SIZE)
    assert jnp.allclose(out, ref, atol=1e-4, rtol=1e-4)

    # 2) Multi-row batch with a partial tail tile, default bf16 storage
    #    (f32 accumulation) -> looser tolerance.
    x2 = jax.random.normal(k_x2, (384, INPUT_SIZE), jnp.float32)
    out2 = jax.block_until_ready(encoder_forward(x2, w1, b1, w2, b2))
    ref2 = encoder_reference(x2, w1, b1, w2, b2)
    assert out2.shape == (384, LATENT_SIZE)
    assert jnp.allclose(out2, ref2, atol=2e-2, rtol=2e-2)

    # 3) Larger batch exercising bm=1024 full tiles and the >=2-step grid
    #    split used for v7x megacore sharding.
    x3 = jax.random.normal(k_x3, (2048, INPUT_SIZE), jnp.float32)
    out3 = jax.block_until_ready(encoder_forward(x3, w1, b1, w2, b2))
    ref3 = encoder_reference(x3, w1, b1, w2, b2)
    assert out3.shape == (2048, LATENT_SIZE)
    assert jnp.allclose(out3, ref3, atol=2e-2, rtol=2e-2)

    print("KERNEL_OK")
</pallas_src>

<mosaic_0001>
module attributes {stable_mosaic.version = 11 : i64} {
  func.func @encoder_kernel(%arg0: i32, %arg1: memref<16x784xf32, #tpu.memory_space<vmem>>, %arg2: memref<784x128xf32, #tpu.memory_space<vmem>>, %arg3: memref<1x128xf32, #tpu.memory_space<vmem>>, %arg4: memref<128x128xf32, #tpu.memory_space<vmem>>, %arg5: memref<1x128xf32, #tpu.memory_space<vmem>>, %arg6: memref<16x128xf32, #tpu.memory_space<vmem>>) attributes {dimension_semantics = [#tpu.dimension_semantics<parallel>], iteration_bounds = array<i64: 1>, scalar_prefetch = 0 : i64, scratch_operands = 0 : i64, tpu.core_type = #tpu.core_type<tc>, window_params = [{transform_indices = @transform_0, window_bounds = array<i64: 16, 784>}, {pipeline_mode = #tpu.pipeline_mode<synchronous>, transform_indices = @transform_1, window_bounds = array<i64: 784, 128>}, {pipeline_mode = #tpu.pipeline_mode<synchronous>, transform_indices = @transform_2, window_bounds = array<i64: 1, 128>}, {pipeline_mode = #tpu.pipeline_mode<synchronous>, transform_indices = @transform_3, window_bounds = array<i64: 128, 128>}, {pipeline_mode = #tpu.pipeline_mode<synchronous>, transform_indices = @transform_4, window_bounds = array<i64: 1, 128>}, {transform_indices = @transform_5, window_bounds = array<i64: 16, 128>}]} {
    %c0 = arith.constant 0 : index
    %c0_0 = arith.constant 0 : index
    %0 = vector.load %arg1[%c0, %c0_0] : memref<16x784xf32, #tpu.memory_space<vmem>>, vector<16x784xf32>
    %c0_1 = arith.constant 0 : index
    %c0_2 = arith.constant 0 : index
    %1 = vector.load %arg2[%c0_1, %c0_2] : memref<784x128xf32, #tpu.memory_space<vmem>>, vector<784x128xf32>
    %cst = arith.constant dense<0.000000e+00> : vector<16x128xf32>
    %2 = tpu.matmul %0, %1, %cst {dimension_numbers = #tpu.dot_dimension_numbers<[1], [0], [0], [1], [0, 0, 1, 1], [], []>} : vector<16x784xf32>, vector<784x128xf32>, vector<16x128xf32> -> vector<16x128xf32>
    %c0_3 = arith.constant 0 : index
    %c0_4 = arith.constant 0 : index
    %3 = vector.load %arg3[%c0_3, %c0_4] : memref<1x128xf32, #tpu.memory_space<vmem>>, vector<1x128xf32>
    %4 = vector.broadcast %3 : vector<1x128xf32> to vector<16x128xf32>
    %5 = arith.addf %2, %4 : vector<16x128xf32>
    %cst_5 = arith.constant 0.000000e+00 : f32
    %6 = vector.broadcast %cst_5 : f32 to vector<16x128xf32>
    %7 = arith.maximumf %5, %6 : vector<16x128xf32>
    %c0_6 = arith.constant 0 : index
    %c0_7 = arith.constant 0 : index
    %8 = vector.load %arg4[%c0_6, %c0_7] : memref<128x128xf32, #tpu.memory_space<vmem>>, vector<128x128xf32>
    %cst_8 = arith.constant dense<0.000000e+00> : vector<16x128xf32>
    %9 = tpu.matmul %7, %8, %cst_8 {dimension_numbers = #tpu.dot_dimension_numbers<[1], [0], [0], [1], [0, 0, 1, 1], [], []>} : vector<16x128xf32>, vector<128x128xf32>, vector<16x128xf32> -> vector<16x128xf32>
    %c0_9 = arith.constant 0 : index
    %c0_10 = arith.constant 0 : index
    %10 = vector.load %arg5[%c0_9, %c0_10] : memref<1x128xf32, #tpu.memory_space<vmem>>, vector<1x128xf32>
    %11 = vector.broadcast %10 : vector<1x128xf32> to vector<16x128xf32>
    %12 = arith.addf %9, %11 : vector<16x128xf32>
    %c0_11 = arith.constant 0 : index
    %c0_12 = arith.constant 0 : index
    %13 = vector.load %arg6[%c0_11, %c0_12] : memref<16x128xf32, #tpu.memory_space<vmem>>, vector<16x128xf32>
    tpu.vector_store %arg6[%c0_11, %c0_12], %12 {strides = array<i32>} : memref<16x128xf32, #tpu.memory_space<vmem>>, vector<16x128xf32>,
    return
  }
  func.func @transform_0(%arg0: i32) -> (i32, i32) {
    %c0_i32 = arith.constant 0 : i32
    %c0_i32_0 = arith.constant 0 : i32
    return %arg0, %c0_i32 : i32, i32
  }
  func.func @transform_1(%arg0: i32) -> (i32, i32) {
    %c0_i32 = arith.constant 0 : i32
    %c0_i32_0 = arith.constant 0 : i32
    %c0_i32_1 = arith.constant 0 : i32
    return %c0_i32, %c0_i32_0 : i32, i32
  }
  func.func @transform_2(%arg0: i32) -> (i32, i32) {
    %c0_i32 = arith.constant 0 : i32
    %c0_i32_0 = arith.constant 0 : i32
    %c0_i32_1 = arith.constant 0 : i32
    return %c0_i32, %c0_i32_0 : i32, i32
  }
  func.func @transform_3(%arg0: i32) -> (i32, i32) {
    %c0_i32 = arith.constant 0 : i32
    %c0_i32_0 = arith.constant 0 : i32
    %c0_i32_1 = arith.constant 0 : i32
    return %c0_i32, %c0_i32_0 : i32, i32
  }
  func.func @transform_4(%arg0: i32) -> (i32, i32) {
    %c0_i32 = arith.constant 0 : i32
    %c0_i32_0 = arith.constant 0 : i32
    %c0_i32_1 = arith.constant 0 : i32
    return %c0_i32, %c0_i32_0 : i32, i32
  }
  func.func @transform_5(%arg0: i32) -> (i32, i32) {
    %c0_i32 = arith.constant 0 : i32
    %c0_i32_0 = arith.constant 0 : i32
    return %arg0, %c0_i32 : i32, i32
  }
}

</mosaic_0001>

<llo_original>
// kernel: tpu_custom_call.1
$region0: #{tpu_custom_call.1}
  #allocation0 [shape = 'u32[]', space=smem, size = 0x4, offset = 0x4, fixed_abs, tag = 'smem constant byte address 0x4 - core index']
  #allocation1 [shape = 'u32[144,128]{1,0:T(1,128)}', space=vmem, size = 0x12000, scoped, tag = 'internal scratch']
  %s0 = inlined_call_operand.hbm [shape: f32[2,784], index: 0, kind: input, shape index: {}]
  %s1 = inlined_call_operand.hbm [shape: f32[784,128], index: 1, kind: input, shape index: {}]
  %s2 = inlined_call_operand.vmem [shape: f32[1,128], index: 2, kind: input, shape index: {}]
  %s3 = inlined_call_operand.hbm [shape: f32[128,128], index: 3, kind: input, shape index: {}]
  %s4 = inlined_call_operand.vmem [shape: f32[1,128], index: 4, kind: input, shape index: {}]
  %s5 = inlined_call_operand.hbm [shape: f32[2,128], index: 5, kind: output, shape index: {}]
  %s6 = sld [smem:[#allocation0]]
  $region42: #{tpu_custom_call.1} parent=0
    _
  %s8 = ssub.s32 1, %s6
  %s9 = scalar_select 0, %s8, %s6
  $region1: #{tpu_custom_call.1} parent=0
    #allocation2 [shape = 'u8[57344]{0}', space=vmem, size = 0xe000, scoped, tag = 'input window, operand 0, single buffered']
    #allocation3 [shape = 's32[1]{0}', space=sflag, size = 0x4, scoped, tag = 'scoped memory for tpu_custom_call.1']
    #allocation4 [shape = 's32[1]{0}', space=sflag, size = 0x4, scoped, tag = 'scoped memory for tpu_custom_call.1']
    #allocation5 [shape = 'u8[401408]{0}', space=vmem, size = 0x62000, scoped, tag = 'input window, operand 1, single buffered']
    #allocation6 [shape = 's32[1]{0}', space=sflag, size = 0x4, scoped, tag = 'scoped memory for tpu_custom_call.1']
    #allocation7 [shape = 'u8[65536]{0}', space=vmem, size = 0x10000, scoped, tag = 'input window, operand 3, single buffered']
    #allocation8 [shape = 'u8[8192]{0}', space=vmem, size = 0x2000, scoped, tag = 'output window, operand 0, single buffered']
    %10 = vsyncpa [#allocation3], 0
    %11 = vsyncpa [#allocation6], 0
    %12 = vsyncpa [#allocation4], 0
    // Predicated region
    $region2: #{tpu_custom_call.1} parent=1 // pred_check
      _
    $region3: #{tpu_custom_call.1} parent=1 // pred_check_branch
      %14 = sbr.rel (0) target = $region5
    $region4: #{tpu_custom_call.1} parent=1 // pred_region
      %s16 = ssub.s32 1792, 224
      %17 = vsyncadd [#allocation3], %s16
      %s18 = sshll.u32 [#allocation2], 4
      %s19 = int_to_ptr.vmem [resolvable:$true] %s18
      %24 = dma.hbm_to_vmem [thread:$0]  %s0, 224, %s19, [#allocation3], 224, 224, 14
    $region5: #{tpu_custom_call.1} parent=1 // pred_fallthru
      _
    // Predicated region
    $region6: #{tpu_custom_call.1} parent=1 // pred_check
      _
    $region7: #{tpu_custom_call.1} parent=1 // pred_check_branch
      %26 = sbr.rel (0) target = $region9
    $region8: #{tpu_custom_call.1} parent=1 // pred_region
      %s28 = ssub.s32 12544, 12544
      %29 = vsyncadd [#allocation6], %s28
      %s30 = sshll.u32 [#allocation5], 4
      %s31 = int_to_ptr.vmem [resolvable:$true] %s30
      %36 = dma.hbm_to_vmem [thread:$0]  %s1, 12544, %s31, [#allocation6], 128, 128, 8
    $region9: #{tpu_custom_call.1} parent=1 // pred_fallthru
      _
    // Predicated region
    $region10: #{tpu_custom_call.1} parent=1 // pred_check
      _
    $region11: #{tpu_custom_call.1} parent=1 // pred_check_branch
      %38 = sbr.rel (0) target = $region13
    $region12: #{tpu_custom_call.1} parent=1 // pred_region
      _
    $region13: #{tpu_custom_call.1} parent=1 // pred_fallthru
      _
    // Predicated region
    $region14: #{tpu_custom_call.1} parent=1 // pred_check
      _
    $region15: #{tpu_custom_call.1} parent=1 // pred_check_branch
      %40 = sbr.rel (0) target = $region17
    $region16: #{tpu_custom_call.1} parent=1 // pred_region
      %s42 = ssub.s32 2048, 2048
      %43 = vsyncadd [#allocation6], %s42
      %s44 = sshll.u32 [#allocation7], 4
      %s45 = int_to_ptr.vmem [resolvable:$true] %s44
      %50 = dma.hbm_to_vmem [thread:$0]  %s3, 2048, %s45, [#allocation6], 128, 128, 8
    $region17: #{tpu_custom_call.1} parent=1 // pred_fallthru
      _
    // Predicated region
    $region18: #{tpu_custom_call.1} parent=1 // pred_check
      _
    $region19: #{tpu_custom_call.1} parent=1 // pred_check_branch
      %52 = sbr.rel (0) target = $region21
    $region20: #{tpu_custom_call.1} parent=1 // pred_region
      _
    $region21: #{tpu_custom_call.1} parent=1 // pred_fallthru
      _
    // Predicated region
    $region22: #{tpu_custom_call.1} parent=1 // pred_check
      _
    $region23: #{tpu_custom_call.1} parent=1 // pred_check_branch
      %54 = sbr.rel (0) target = $region25
    $region24: #{tpu_custom_call.1} parent=1 // pred_region
      %55 = dma.done [#allocation3], 1792
    $region25: #{tpu_custom_call.1} parent=1 // pred_fallthru
      _
    // Predicated region
    $region26: #{tpu_custom_call.1} parent=1 // pred_check
      _
    $region27: #{tpu_custom_call.1} parent=1 // pred_check_branch
      %57 = sbr.rel (0) target = $region29
    $region28: #{tpu_custom_call.1} parent=1 // pred_region
      %58 = dma.done [#allocation6], 12544
    $region29: #{tpu_custom_call.1} parent=1 // pred_fallthru
      _
    // Predicated region
    $region30: #{tpu_custom_call.1} parent=1 // pred_check
      _
    $region31: #{tpu_custom_call.1} parent=1 // pred_check_branch
      %60 = sbr.rel (0) target = $region33
    $region32: #{tpu_custom_call.1} parent=1 // pred_region
      %61 = dma.done [#allocation6], 2048
    $region33: #{tpu_custom_call.1} parent=1 // pred_fallthru
      _
    %v62 = vld [vmem:[#allocation2] sm:$0xff]
    %v63 = vld [vmem:[#allocation2 + $0x8] sm:$0x3f]
    %v64 = vld [vmem:[#allocation2 + $0xe] sm:$0xff]
    %v65 = vld [vmem:[#allocation2 + $0x16] sm:$0x3f]
    %v66 = vld [vmem:[#allocation2 + $0x1c] sm:$0xff]
    %v67 = vld [vmem:[#allocation2 + $0x24] sm:$0x3f]
    %v68 = vld [vmem:[#allocation2 + $0x2a] sm:$0xff]
    %v69 = vld [vmem:[#allocation2 + $0x32] sm:$0x3f]
    %v70 = vld [vmem:[#allocation2 + $0x38] sm:$0xff]
    %v71 = vld [vmem:[#allocation2 + $0x40] sm:$0x3f]
    %v72 = vld [vmem:[#allocation2 + $0x46] sm:$0xff]
    %v73 = vld [vmem:[#allocation2 + $0x4e] sm:$0x3f]
    %v74 = vld [vmem:[#allocation2 + $0x54] sm:$0xff]
    %v75 = vld [vmem:[#allocation2 + $0x5c] sm:$0x3f]
    %v76 = vld [vmem:[#allocation2 + $0x62] sm:$0xff]
    %v77 = vld [vmem:[#allocation2 + $0x6a] sm:$0x3f]
    %v78 = vld [vmem:[#allocation5] sm:$0xff]
    %v79 = vld [vmem:[#allocation5 + $0x8] sm:$0xff]
    %v80 = vld [vmem:[#allocation5 + $0x10] sm:$0xff]
    %v81 = vld [vmem:[#allocation5 + $0x18] sm:$0xff]
    %v82 = vld [vmem:[#allocation5 + $0x20] sm:$0xff]
    %v83 = vld [vmem:[#allocation5 + $0x28] sm:$0xff]
    %v84 = vld [vmem:[#allocation5 + $0x30] sm:$0xff]
    %v85 = vld [vmem:[#allocation5 + $0x38] sm:$0xff]
    %v86 = vld [vmem:[#allocation5 + $0x40] sm:$0xff]
    %v87 = vld [vmem:[#allocation5 + $0x48] sm:$0xff]
    %v88 = vld [vmem:[#allocation5 + $0x50] sm:$0xff]
    %v89 = vld [vmem:[#allocation5 + $0x58] sm:$0xff]
    %v90 = vld [vmem:[#allocation5 + $0x60] sm:$0xff]
    %v91 = vld [vmem:[#allocation5 + $0x68] sm:$0xff]
    %v92 = vld [vmem:[#allocation5 + $0x70] sm:$0xff]
    %v93 = vld [vmem:[#allocation5 + $0x78] sm:$0xff]
    %v94 = vld [vmem:[#allocation5 + $0x80] sm:$0xff]
    %v95 = vld [vmem:[#allocation5 + $0x88] sm:$0xff]
    %v96 = vld [vmem:[#allocation5 + $0x90] sm:$0xff]
    %v97 = vld [vmem:[#allocation5 + $0x98] sm:$0xff]
    %v98 = vld [vmem:[#allocation5 + $0xa0] sm:$0xff]
    %v99 = vld [vmem:[#allocation5 + $0xa8] sm:$0xff]
    %v100 = vld [vmem:[#allocation5 + $0xb0] sm:$0xff]
    %v101 = vld [vmem:[#allocation5 + $0xb8] sm:$0xff]
    %v102 = vld [vmem:[#allocation5 + $0xc0] sm:$0xff]
    %v103 = vld [vmem:[#allocation5 + $0xc8] sm:$0xff]
    %v104 = vld [vmem:[#allocation5 + $0xd0] sm:$0xff]
    %v105 = vld [vmem:[#allocation5 + $0xd8] sm:$0xff]
    %v106 = vld [vmem:[#allocation5 + $0xe0] sm:$0xff]
    %v107 = vld [vmem:[#allocation5 + $0xe8] sm:$0xff]
    %v108 = vld [vmem:[#allocation5 + $0xf0] sm:$0xff]
    %v109 = vld [vmem:[#allocation5 + $0xf8] sm:$0xff]
    %v110 = vld [vmem:[#allocation5 + $0x100] sm:$0xff]
    %v111 = vld [vmem:[#allocation5 + $0x108] sm:$0xff]
    %v112 = vld [vmem:[#allocation5 + $0x110] sm:$0xff]
    %v113 = vld [vmem:[#allocation5 + $0x118] sm:$0xff]
    %v114 = vld [vmem:[#allocation5 + $0x120] sm:$0xff]
    %v115 = vld [vmem:[#allocation5 + $0x128] sm:$0xff]
    %v116 = vld [vmem:[#allocation5 + $0x130] sm:$0xff]
    %v117 = vld [vmem:[#allocation5 + $0x138] sm:$0xff]
    %v118 = vld [vmem:[#allocation5 + $0x140] sm:$0xff]
    %v119 = vld [vmem:[#allocation5 + $0x148] sm:$0xff]
    %v120 = vld [vmem:[#allocation5 + $0x150] sm:$0xff]
    %v121 = vld [vmem:[#allocation5 + $0x158] sm:$0xff]
    %v122 = vld [vmem:[#allocation5 + $0x160] sm:$0xff]
    %v123 = vld [vmem:[#allocation5 + $0x168] sm:$0xff]
    %v124 = vld [vmem:[#allocation5 + $0x170] sm:$0xff]
    %v125 = vld [vmem:[#allocation5 + $0x178] sm:$0xff]
    %v126 = vld [vmem:[#allocation5 + $0x180] sm:$0xff]
    %v127 = vld [vmem:[#allocation5 + $0x188] sm:$0xff]
    %v128 = vld [vmem:[#allocation5 + $0x190] sm:$0xff]
    %v129 = vld [vmem:[#allocation5 + $0x198] sm:$0xff]
    %v130 = vld [vmem:[#allocation5 + $0x1a0] sm:$0xff]
    %v131 = vld [vmem:[#allocation5 + $0x1a8] sm:$0xff]
    %v132 = vld [vmem:[#allocation5 + $0x1b0] sm:$0xff]
    %v133 = vld [vmem:[#allocation5 + $0x1b8] sm:$0xff]
    %v134 = vld [vmem:[#allocation5 + $0x1c0] sm:$0xff]
    %v135 = vld [vmem:[#allocation5 + $0x1c8] sm:$0xff]
    %v136 = vld [vmem:[#allocation5 + $0x1d0] sm:$0xff]
    %v137 = vld [vmem:[#allocation5 + $0x1d8] sm:$0xff]
    %v138 = vld [vmem:[#allocation5 + $0x1e0] sm:$0xff]
    %v139 = vld [vmem:[#allocation5 + $0x1e8] sm:$0xff]
    %v140 = vld [vmem:[#allocation5 + $0x1f0] sm:$0xff]
    %v141 = vld [vmem:[#allocation5 + $0x1f8] sm:$0xff]
    %v142 = vld [vmem:[#allocation5 + $0x200] sm:$0xff]
    %v143 = vld [vmem:[#allocation5 + $0x208] sm:$0xff]
    %v144 = vld [vmem:[#allocation5 + $0x210] sm:$0xff]
    %v145 = vld [vmem:[#allocation5 + $0x218] sm:$0xff]
    %v146 = vld [vmem:[#allocation5 + $0x220] sm:$0xff]
    %v147 = vld [vmem:[#allocation5 + $0x228] sm:$0xff]
    %v148 = vld [vmem:[#allocation5 + $0x230] sm:$0xff]
    %v149 = vld [vmem:[#allocation5 + $0x238] sm:$0xff]
    %v150 = vld [vmem:[#allocation5 + $0x240] sm:$0xff]
    %v151 = vld [vmem:[#allocation5 + $0x248] sm:$0xff]
    %v152 = vld [vmem:[#allocation5 + $0x250] sm:$0xff]
    %v153 = vld [vmem:[#allocation5 + $0x258] sm:$0xff]
    %v154 = vld [vmem:[#allocation5 + $0x260] sm:$0xff]
    %v155 = vld [vmem:[#allocation5 + $0x268] sm:$0xff]
    %v156 = vld [vmem:[#allocation5 + $0x270] sm:$0xff]
    %v157 = vld [vmem:[#allocation5 + $0x278] sm:$0xff]
    %v158 = vld [vmem:[#allocation5 + $0x280] sm:$0xff]
    %v159 = vld [vmem:[#allocation5 + $0x288] sm:$0xff]
    %v160 = vld [vmem:[#allocation5 + $0x290] sm:$0xff]
    %v161 = vld [vmem:[#allocation5 + $0x298] sm:$0xff]
    %v162 = vld [vmem:[#allocation5 + $0x2a0] sm:$0xff]
    %v163 = vld [vmem:[#allocation5 + $0x2a8] sm:$0xff]
    %v164 = vld [vmem:[#allocation5 + $0x2b0] sm:$0xff]
    %v165 = vld [vmem:[#allocation5 + $0x2b8] sm:$0xff]
    %v166 = vld [vmem:[#allocation5 + $0x2c0] sm:$0xff]
    %v167 = vld [vmem:[#allocation5 + $0x2c8] sm:$0xff]
    %v168 = vld [vmem:[#allocation5 + $0x2d0] sm:$0xff]
    %v169 = vld [vmem:[#allocation5 + $0x2d8] sm:$0xff]
    %v170 = vld [vmem:[#allocation5 + $0x2e0] sm:$0xff]
    %v171 = vld [vmem:[#allocation5 + $0x2e8] sm:$0xff]
    %v172 = vld [vmem:[#allocation5 + $0x2f0] sm:$0xff]
    %v173 = vld [vmem:[#allocation5 + $0x2f8] sm:$0xff]
    %v174 = vld [vmem:[#allocation5 + $0x300] sm:$0xff]
    %v175 = vld [vmem:[#allocation5 + $0x308] sm:$0xff]
    %v176 = vld [vmem:[%s2] sm:$0x1]
    %v178 = vlaneseq
    %v179 = vshrl.u32 %v178, 7
    %v180 = vsub.s32 0, %v179
    %v181 = vrot.slane %v176, %v180
    %v199 = vcombine.low %v62, %v64
    %v200 = vcombine.high %v62, %v64
    %v201 = vcombine.low %v66, %v68
    %v202 = vcombine.high %v66, %v68
    %v204 = vunpack.c.l.s4 1983009808
    %v205 = vunpack.c.0.s8 %v204
    %v206 = vlaneseq
    %v207 = vshrl.u32 %v206, 7
    %v208 = vsub.s32 %v205, %v207
    %v209 = vrot.slane %v199, %v208
    %v211 = vunpack.c.l.s4 1983009808
    %v212 = vunpack.c.0.s8 %v211
    %v213 = vlaneseq
    %v214 = vshrl.u32 %v213, 7
    %v215 = vsub.s32 %v212, %v214
    %v216 = vrot.slane %v200, %v215
    %v218 = vunpack.c.l.s4 1983009808
    %v219 = vunpack.c.0.s8 %v218
    %v220 = vlaneseq
    %v221 = vshrl.u32 %v220, 7
    %v222 = vsub.s32 %v219, %v221
    %v223 = vrot.slane %v201, %v222
    %v225 = vunpack.c.l.s4 1983009808
    %v226 = vunpack.c.0.s8 %v225
    %v227 = vlaneseq
    %v228 = vshrl.u32 %v227, 7
    %v229 = vsub.s32 %v226, %v228
    %v230 = vrot.slane %v202, %v229
    %v231 = vcombine.low %v209, %v223
    %v232 = vcombine.high %v209, %v223
    %v233 = vcombine.low %v216, %v230
    %v234 = vcombine.high %v216, %v230
    %v235 = vcombine.low %v63, %v65
    %v236 = vcombine.high %v63, %v65
    %v237 = vcombine.low %v67, %v69
    %v238 = vcombine.high %v67, %v69
    %v240 = vunpack.c.l.s4 1983009808
    %v241 = vunpack.c.0.s8 %v240
    %v242 = vlaneseq
    %v243 = vshrl.u32 %v242, 7
    %v244 = vsub.s32 %v241, %v243
    %v245 = vrot.slane %v235, %v244
    %v247 = vunpack.c.l.s4 1983009808
    %v248 = vunpack.c.0.s8 %v247
    %v249 = vlaneseq
    %v250 = vshrl.u32 %v249, 7
    %v251 = vsub.s32 %v248, %v250
    %v252 = vrot.slane %v236, %v251
    %v254 = vunpack.c.l.s4 1983009808
    %v255 = vunpack.c.0.s8 %v254
    %v256 = vlaneseq
    %v257 = vshrl.u32 %v256, 7
    %v258 = vsub.s32 %v255, %v257
    %v259 = vrot.slane %v237, %v258
    %v261 = vunpack.c.l.s4 1983009808
    %v262 = vunpack.c.0.s8 %v261
    %v263 = vlaneseq
    %v264 = vshrl.u32 %v263, 7
    %v265 = vsub.s32 %v262, %v264
    %v266 = vrot.slane %v238, %v265
    %v267 = vcombine.low %v245, %v259
    %v268 = vcombine.high %v245, %v259
    %v269 = vcombine.low %v252, %v266
    %v270 = vcombine.low %v70, %v72
    %v271 = vcombine.high %v70, %v72
    %v272 = vcombine.low %v74, %v76
    %v273 = vcombine.high %v74, %v76
    %v275 = vunpack.c.l.s4 1983009808
    %v276 = vunpack.c.0.s8 %v275
    %v277 = vlaneseq
    %v278 = vshrl.u32 %v277, 7
    %v279 = vsub.s32 %v276, %v278
    %v280 = vrot.slane %v270, %v279
    %v282 = vunpack.c.l.s4 1983009808
    %v283 = vunpack.c.0.s8 %v282
    %v284 = vlaneseq
    %v285 = vshrl.u32 %v284, 7
    %v286 = vsub.s32 %v283, %v285
    %v287 = vrot.slane %v271, %v286
    %v289 = vunpack.c.l.s4 1983009808
    %v290 = vunpack.c.0.s8 %v289
    %v291 = vlaneseq
    %v292 = vshrl.u32 %v291, 7
    %v293 = vsub.s32 %v290, %v292
    %v294 = vrot.slane %v272, %v293
    %v296 = vunpack.c.l.s4 1983009808
    %v297 = vunpack.c.0.s8 %v296
    %v298 = vlaneseq
    %v299 = vshrl.u32 %v298, 7
    %v300 = vsub.s32 %v297, %v299
    %v301 = vrot.slane %v273, %v300
    %v302 = vcombine.low %v280, %v294
    %v303 = vcombine.high %v280, %v294
    %v304 = vcombine.low %v287, %v301
    %v305 = vcombine.high %v287, %v301
    %v306 = vcombine.low %v71, %v73
    %v307 = vcombine.high %v71, %v73
    %v308 = vcombine.low %v75, %v77
    %v309 = vcombine.high %v75, %v77
    %v311 = vunpack.c.l.s4 1983009808
    %v312 = vunpack.c.0.s8 %v311
    %v313 = vlaneseq
    %v314 = vshrl.u32 %v313, 7
    %v315 = vsub.s32 %v312, %v314
    %v316 = vrot.slane %v306, %v315
    %v318 = vunpack.c.l.s4 1983009808
    %v319 = vunpack.c.0.s8 %v318
    %v320 = vlaneseq
    %v321 = vshrl.u32 %v320, 7
    %v322 = vsub.s32 %v319, %v321
    %v323 = vrot.slane %v307, %v322
    %v325 = vunpack.c.l.s4 1983009808
    %v326 = vunpack.c.0.s8 %v325
    %v327 = vlaneseq
    %v328 = vshrl.u32 %v327, 7
    %v329 = vsub.s32 %v326, %v328
    %v330 = vrot.slane %v308, %v329
    %v332 = vunpack.c.l.s4 1983009808
    %v333 = vunpack.c.0.s8 %v332
    %v334 = vlaneseq
    %v335 = vshrl.u32 %v334, 7
    %v336 = vsub.s32 %v333, %v335
    %v337 = vrot.slane %v309, %v336
    %v338 = vcombine.low %v316, %v330
    %v339 = vcombine.high %v316, %v330
    %v340 = vcombine.low %v323, %v337
    %vm353 = vcmask 130048
    %v354 = vsel %vm353, %v269, 0
    %v356 = vsel %vm353, %v340, 0
    %358 = vmatprep.subr.mxu0 0.0
    %359 = vmatpush1.msra.mxu0 %v78
    %360 = vmatprep.subr.mxu0 0.0
    %361 = vmatpush1.msra.mxu0 %v79
    %362 = vmatprep.subr.mxu0 0.0
    %363 = vmatpush1.msra.mxu0 %v80
    %364 = vmatprep.subr.mxu0 0.0
    %365 = vmatpush1.msra.mxu0 %v81
    %366 = vmatprep.subr.mxu0 0.0
    %367 = vmatpush1.msra.mxu0 %v82
    %368 = vmatprep.subr.mxu0 0.0
    %369 = vmatpush1.msra.mxu0 %v83
    %370 = vmatprep.subr.mxu0 0.0
    %371 = vmatpush1.msra.mxu0 %v84
    %372 = vmatprep.subr.mxu0 0.0
    %373 = vmatpush1.msra.mxu0 %v85
    %374 = vmatprep.subr.mxu0 0.0
    %375 = vmatpush1.msra.mxu0 %v86
    %376 = vmatprep.subr.mxu0 0.0
    %377 = vmatpush1.msra.mxu0 %v87
    %378 = vmatprep.subr.mxu0 0.0
    %379 = vmatpush1.msra.mxu0 %v88
    %380 = vmatprep.subr.mxu0 0.0
    %381 = vmatpush1.msra.mxu0 %v89
    %382 = vmatprep.subr.mxu0 0.0
    %383 = vmatpush1.msra.mxu0 %v90
    %384 = vmatprep.subr.mxu0 0.0
    %385 = vmatpush1.msra.mxu0 %v91
    %386 = vmatprep.subr.mxu0 0.0
    %387 = vmatpush1.msra.mxu0 %v92
    %388 = vmatprep.subr.mxu0 0.0
    %389 = vmatpush1.msra.mxu0 %v93
    %390 = vmatprep.subr.mxu0 0.0
    %391 = vmatpush1.msra.mxu0 %v94
    %392 = vmatprep.subr.mxu0 0.0
    %393 = vmatpush1.msra.mxu0 %v95
    %394 = vmatprep.subr.mxu0 0.0
    %395 = vmatpush1.msra.mxu0 %v96
    %396 = vmatprep.subr.mxu0 0.0
    %397 = vmatpush1.msra.mxu0 %v97
    %398 = vmatprep.subr.mxu0 0.0
    %399 = vmatpush1.msra.mxu0 %v98
    %400 = vmatprep.subr.mxu0 0.0
    %401 = vmatpush1.msra.mxu0 %v99
    %402 = vmatprep.subr.mxu0 0.0
    %403 = vmatpush1.msra.mxu0 %v100
    %404 = vmatprep.subr.mxu0 0.0
    %405 = vmatpush1.msra.mxu0 %v101
    %406 = vmatprep.subr.mxu0 0.0
    %407 = vmatpush1.msra.mxu0 %v102
    %408 = vmatprep.subr.mxu0 0.0
    %409 = vmatpush1.msra.mxu0 %v103
    %410 = vmatprep.subr.mxu0 0.0
    %411 = vmatpush1.msra.mxu0 %v104
    %412 = vmatprep.subr.mxu0 0.0
    %413 = vmatpush1.msra.mxu0 %v105
    %414 = vmatprep.subr.mxu0 0.0
    %415 = vmatpush1.msra.mxu0 %v106
    %416 = vmatprep.subr.mxu0 0.0
    %417 = vmatpush1.msra.mxu0 %v107
    %418 = vmatprep.subr.mxu0 0.0
    %419 = vmatpush1.msra.mxu0 %v108
    %420 = vmatprep.subr.mxu0 0.0
    %421 = vmatpush1.msra.mxu0 %v109
    %422 = vmatprep.mubr.f32.mxu0 %v232
    %423 = vmatmul.mubr.f32.gmra.mrb[0].mxu0 %v231
    %v424 = vpop.f32.mrb[0].mxu0
    %v425 = vadd.f32 %v181, %v424
    %v426 = vpop.f32.mrb[0].mxu0
    %427 = vmatprep.mubr.f32.mxu0 %v303
    %428 = vmatmul.mubr.f32.gmra.mrb[0].mxu0 %v302
    %v429 = vpop.f32.mrb[0].mxu0
    %v430 = vadd.f32 %v181, %v429
    %v431 = vpop.f32.mrb[0].mxu0
    %432 = vdwg.mxu0
    %433 = vmatprep.subr.mxu0 0.0
    %434 = vmatpush1.msra.mxu0 %v110
    %435 = vmatprep.subr.mxu0 0.0
    %436 = vmatpush1.msra.mxu0 %v111
    %437 = vmatprep.subr.mxu0 0.0
    %438 = vmatpush1.msra.mxu0 %v112
    %439 = vmatprep.subr.mxu0 0.0
    %440 = vmatpush1.msra.mxu0 %v113
    %441 = vmatprep.subr.mxu0 0.0
    %442 = vmatpush1.msra.mxu0 %v114
    %443 = vmatprep.subr.mxu0 0.0
    %444 = vmatpush1.msra.mxu0 %v115
    %445 = vmatprep.subr.mxu0 0.0
    %446 = vmatpush1.msra.mxu0 %v116
    %447 = vmatprep.subr.mxu0 0.0
    %448 = vmatpush1.msra.mxu0 %v117
    %449 = vmatprep.subr.mxu0 0.0
    %450 = vmatpush1.msra.mxu0 %v118
    %451 = vmatprep.subr.mxu0 0.0
    %452 = vmatpush1.msra.mxu0 %v119
    %453 = vmatprep.subr.mxu0 0.0
    %454 = vmatpush1.msra.mxu0 %v120
    %455 = vmatprep.subr.mxu0 0.0
    %456 = vmatpush1.msra.mxu0 %v121
    %457 = vmatprep.subr.mxu0 0.0
    %458 = vmatpush1.msra.mxu0 %v122
    %459 = vmatprep.subr.mxu0 0.0
    %460 = vmatpush1.msra.mxu0 %v123
    %461 = vmatprep.subr.mxu0 0.0
    %462 = vmatpush1.msra.mxu0 %v124
    %463 = vmatprep.subr.mxu0 0.0
    %464 = vmatpush1.msra.mxu0 %v125
    %465 = vmatprep.subr.mxu0 0.0
    %466 = vmatpush1.msra.mxu0 %v126
    %467 = vmatprep.subr.mxu0 0.0
    %468 = vmatpush1.msra.mxu0 %v127
    %469 = vmatprep.subr.mxu0 0.0
    %470 = vmatpush1.msra.mxu0 %v128
    %471 = vmatprep.subr.mxu0 0.0
    %472 = vmatpush1.msra.mxu0 %v129
    %473 = vmatprep.subr.mxu0 0.0
    %474 = vmatpush1.msra.mxu0 %v130
    %475 = vmatprep.subr.mxu0 0.0
    %476 = vmatpush1.msra.mxu0 %v131
    %477 = vmatprep.subr.mxu0 0.0
    %478 = vmatpush1.msra.mxu0 %v132
    %479 = vmatprep.subr.mxu0 0.0
    %480 = vmatpush1.msra.mxu0 %v133
    %481 = vmatprep.subr.mxu0 0.0
    %482 = vmatpush1.msra.mxu0 %v134
    %483 = vmatprep.subr.mxu0 0.0
    %484 = vmatpush1.msra.mxu0 %v135
    %485 = vmatprep.subr.mxu0 0.0
    %486 = vmatpush1.msra.mxu0 %v136
    %487 = vmatprep.subr.mxu0 0.0
    %488 = vmatpush1.msra.mxu0 %v137
    %489 = vmatprep.subr.mxu0 0.0
    %490 = vmatpush1.msra.mxu0 %v138
    %491 = vmatprep.subr.mxu0 0.0
    %492 = vmatpush1.msra.mxu0 %v139
    %493 = vmatprep.subr.mxu0 0.0
    %494 = vmatpush1.msra.mxu0 %v140
    %495 = vmatprep.subr.mxu0 0.0
    %496 = vmatpush1.msra.mxu0 %v141
    %497 = vmatprep.mubr.f32.mxu0 %v234
    %498 = vmatmul.mubr.f32.gmra.mrb[0].mxu0 %v233
    %v499 = vpop.f32.mrb[0].mxu0
    %v500 = vadd.f32 %v425, %v499
    %v501 = vpop.f32.mrb[0].mxu0
    %502 = vmatprep.mubr.f32.mxu0 %v305
    %503 = vmatmul.mubr.f32.gmra.mrb[0].mxu0 %v304
    %v504 = vpop.f32.mrb[0].mxu0
    %v505 = vadd.f32 %v430, %v504
    %v506 = vpop.f32.mrb[0].mxu0
    %507 = vdwg.mxu0
    %508 = vmatprep.subr.mxu0 0.0
    %509 = vmatpush1.msra.mxu0 %v142
    %510 = vmatprep.subr.mxu0 0.0
    %511 = vmatpush1.msra.mxu0 %v143
    %512 = vmatprep.subr.mxu0 0.0
    %513 = vmatpush1.msra.mxu0 %v144
    %514 = vmatprep.subr.mxu0 0.0
    %515 = vmatpush1.msra.mxu0 %v145
    %516 = vmatprep.subr.mxu0 0.0
    %517 = vmatpush1.msra.mxu0 %v146
    %518 = vmatprep.subr.mxu0 0.0
    %519 = vmatpush1.msra.mxu0 %v147
    %520 = vmatprep.subr.mxu0 0.0
    %521 = vmatpush1.msra.mxu0 %v148
    %522 = vmatprep.subr.mxu0 0.0
    %523 = vmatpush1.msra.mxu0 %v149
    %524 = vmatprep.subr.mxu0 0.0
    %525 = vmatpush1.msra.mxu0 %v150
    %526 = vmatprep.subr.mxu0 0.0
    %527 = vmatpush1.msra.mxu0 %v151
    %528 = vmatprep.subr.mxu0 0.0
    %529 = vmatpush1.msra.mxu0 %v152
    %530 = vmatprep.subr.mxu0 0.0
    %531 = vmatpush1.msra.mxu0 %v153
    %532 = vmatprep.subr.mxu0 0.0
    %533 = vmatpush1.msra.mxu0 %v154
    %534 = vmatprep.subr.mxu0 0.0
    %535 = vmatpush1.msra.mxu0 %v155
    %536 = vmatprep.subr.mxu0 0.0
    %537 = vmatpush1.msra.mxu0 %v156
    %538 = vmatprep.subr.mxu0 0.0
    %539 = vmatpush1.msra.mxu0 %v157
    %540 = vmatprep.subr.mxu0 0.0
    %541 = vmatpush1.msra.mxu0 %v158
    %542 = vmatprep.subr.mxu0 0.0
    %543 = vmatpush1.msra.mxu0 %v159
    %544 = vmatprep.subr.mxu0 0.0
    %545 = vmatpush1.msra.mxu0 %v160
    %546 = vmatprep.subr.mxu0 0.0
    %547 = vmatpush1.msra.mxu0 %v161
    %548 = vmatprep.subr.mxu0 0.0
    %549 = vmatpush1.msra.mxu0 %v162
    %550 = vmatprep.subr.mxu0 0.0
    %551 = vmatpush1.msra.mxu0 %v163
    %552 = vmatprep.subr.mxu0 0.0
    %553 = vmatpush1.msra.mxu0 %v164
    %554 = vmatprep.subr.mxu0 0.0
    %555 = vmatpush1.msra.mxu0 %v165
    %556 = vmatprep.subr.mxu0 0.0
    %557 = vmatpush1.msra.mxu0 %v166
    %558 = vmatprep.subr.mxu0 0.0
    %559 = vmatpush1.msra.mxu0 %v167
    %560 = vmatprep.subr.mxu0 0.0
    %561 = vmatpush1.msra.mxu0 %v168
    %562 = vmatprep.subr.mxu0 0.0
    %563 = vmatpush1.msra.mxu0 %v169
    %564 = vmatprep.subr.mxu0 0.0
    %565 = vmatpush1.msra.mxu0 %v170
    %566 = vmatprep.subr.mxu0 0.0
    %567 = vmatpush1.msra.mxu0 %v171
    %568 = vmatprep.subr.mxu0 0.0
    %569 = vmatpush1.msra.mxu0 %v172
    %570 = vmatprep.subr.mxu0 0.0
    %571 = vmatpush1.msra.mxu0 %v173
    %572 = vmatprep.mubr.f32.mxu0 %v268
    %573 = vmatmul.mubr.f32.gmra.mrb[0].mxu0 %v267
    %v574 = vpop.f32.mrb[0].mxu0
    %v575 = vadd.f32 %v500, %v574
    %v576 = vpop.f32.mrb[0].mxu0
    %577 = vmatprep.mubr.f32.mxu0 %v339
    %578 = vmatmul.mubr.f32.gmra.mrb[0].mxu0 %v338
    %v579 = vpop.f32.mrb[0].mxu0
    %v580 = vadd.f32 %v505, %v579
    %v581 = vpop.f32.mrb[0].mxu0
    %582 = vdwg.mxu0
    %583 = vmatprep.subr.mxu0 0.0
    %584 = vmatpush1.msra.mxu0 %v174
    %585 = vmatprep.subr.mxu0 0.0
    %586 = vmatpush1.msra.mxu0 %v175
    %587 = vmatprep.subr.mxu0 0.0
    %588 = vmatpush1.msra.mxu0 0.0
    %589 = vmatprep.subr.mxu0 0.0
    %590 = vmatpush1.msra.mxu0 0.0
    %591 = vmatprep.subr.mxu0 0.0
    %592 = vmatpush1.msra.mxu0 0.0
    %593 = vmatprep.subr.mxu0 0.0
    %594 = vmatpush1.msra.mxu0 0.0
    %595 = vmatprep.subr.mxu0 0.0
    %596 = vmatpush1.msra.mxu0 0.0
    %597 = vmatprep.subr.mxu0 0.0
    %598 = vmatpush1.msra.mxu0 0.0
    %599 = vmatprep.subr.mxu0 0.0
    %600 = vmatpush1.msra.mxu0 0.0
    %601 = vmatprep.subr.mxu0 0.0
    %602 = vmatpush1.msra.mxu0 0.0
    %603 = vmatprep.subr.mxu0 0.0
    %604 = vmatpush1.msra.mxu0 0.0
    %605 = vmatprep.subr.mxu0 0.0
    %606 = vmatpush1.msra.mxu0 0.0
    %607 = vmatprep.subr.mxu0 0.0
    %608 = vmatpush1.msra.mxu0 0.0
    %609 = vmatprep.subr.mxu0 0.0
    %610 = vmatpush1.msra.mxu0 0.0
    %611 = vmatprep.subr.mxu0 0.0
    %612 = vmatpush1.msra.mxu0 0.0
    %613 = vmatprep.subr.mxu0 0.0
    %614 = vmatpush1.msra.mxu0 0.0
    %615 = vmatprep.subr.mxu0 0.0
    %616 = vmatpush1.msra.mxu0 0.0
    %617 = vmatprep.subr.mxu0 0.0
    %618 = vmatpush1.msra.mxu0 0.0
    %619 = vmatprep.subr.mxu0 0.0
    %620 = vmatpush1.msra.mxu0 0.0
    %621 = vmatprep.subr.mxu0 0.0
    %622 = vmatpush1.msra.mxu0 0.0
    %623 = vmatprep.subr.mxu0 0.0
    %624 = vmatpush1.msra.mxu0 0.0
    %625 = vmatprep.subr.mxu0 0.0
    %626 = vmatpush1.msra.mxu0 0.0
    %627 = vmatprep.subr.mxu0 0.0
    %628 = vmatpush1.msra.mxu0 0.0
    %629 = vmatprep.subr.mxu0 0.0
    %630 = vmatpush1.msra.mxu0 0.0
    %631 = vmatprep.subr.mxu0 0.0
    %632 = vmatpush1.msra.mxu0 0.0
    %633 = vmatprep.subr.mxu0 0.0
    %634 = vmatpush1.msra.mxu0 0.0
    %635 = vmatprep.subr.mxu0 0.0
    %636 = vmatpush1.msra.mxu0 0.0
    %637 = vmatprep.subr.mxu0 0.0
    %638 = vmatpush1.msra.mxu0 0.0
    %639 = vmatprep.subr.mxu0 0.0
    %640 = vmatpush1.msra.mxu0 0.0
    %641 = vmatprep.subr.mxu0 0.0
    %642 = vmatpush1.msra.mxu0 0.0
    %643 = vmatprep.subr.mxu0 0.0
    %644 = vmatpush1.msra.mxu0 0.0
    %645 = vmatprep.subr.mxu0 0.0
    %646 = vmatpush1.msra.mxu0 0.0
    %647 = vmatprep.mubr.f32.mxu0 0.0
    %648 = vmatmul.mubr.f32.gmra.mrb[0].mxu0 %v354
    %v649 = vpop.f32.mrb[0].mxu0
    %v650 = vadd.f32 %v575, %v649
    %v651 = vpop.f32.mrb[0].mxu0
    %652 = vmatprep.mubr.f32.mxu0 0.0
    %653 = vmatmul.mubr.f32.gmra.mrb[0].mxu0 %v356
    %v654 = vpop.f32.mrb[0].mxu0
    %v655 = vadd.f32 %v580, %v654
    %v656 = vpop.f32.mrb[0].mxu0
    %657 = vdwg.mxu0
    %v658 = vmax.f32 %v650, 0.0
    %v659 = vmax.f32 %v655, 0.0
    %v660 = vld [vmem:[#allocation7] sm:$0xff]
    %v661 = vld [vmem:[#allocation7 + $0x8] sm:$0xff]
    %v662 = vld [vmem:[#allocation7 + $0x10] sm:$0xff]
    %v663 = vld [vmem:[#allocation7 + $0x18] sm:$0xff]
    %v664 = vld [vmem:[#allocation7 + $0x20] sm:$0xff]
    %v665 = vld [vmem:[#allocation7 + $0x28] sm:$0xff]
    %v666 = vld [vmem:[#allocation7 + $0x30] sm:$0xff]
    %v667 = vld [vmem:[#allocation7 + $0x38] sm:$0xff]
    %v668 = vld [vmem:[#allocation7 + $0x40] sm:$0xff]
    %v669 = vld [vmem:[#allocation7 + $0x48] sm:$0xff]
    %v670 = vld [vmem:[#allocation7 + $0x50] sm:$0xff]
    %v671 = vld [vmem:[#allocation7 + $0x58] sm:$0xff]
    %v672 = vld [vmem:[#allocation7 + $0x60] sm:$0xff]
    %v673 = vld [vmem:[#allocation7 + $0x68] sm:$0xff]
    %v674 = vld [vmem:[#allocation7 + $0x70] sm:$0xff]
    %v675 = vld [vmem:[#allocation7 + $0x78] sm:$0xff]
    %v676 = vld [vmem:[%s4] sm:$0x1]
    %v678 = vlaneseq
    %v679 = vshrl.u32 %v678, 7
    %v680 = vsub.s32 0, %v679
    %v681 = vrot.slane %v676, %v680
    %683 = vmatprep.subr.mxu0 0.0
    %684 = vmatpush1.msra.mxu0 %v660
    %685 = vmatprep.subr.mxu0 0.0
    %686 = vmatpush1.msra.mxu0 %v661
    %687 = vmatprep.subr.mxu0 0.0
    %688 = vmatpush1.msra.mxu0 %v662
    %689 = vmatprep.subr.mxu0 0.0
    %690 = vmatpush1.msra.mxu0 %v663
    %691 = vmatprep.subr.mxu0 0.0
    %692 = vmatpush1.msra.mxu0 %v664
    %693 = vmatprep.subr.mxu0 0.0
    %694 = vmatpush1.msra.mxu0 %v665
    %695 = vmatprep.subr.mxu0 0.0
    %696 = vmatpush1.msra.mxu0 %v666
    %697 = vmatprep.subr.mxu0 0.0
    %698 = vmatpush1.msra.mxu0 %v667
    %699 = vmatprep.subr.mxu0 0.0
    %700 = vmatpush1.msra.mxu0 %v668
    %701 = vmatprep.subr.mxu0 0.0
    %702 = vmatpush1.msra.mxu0 %v669
    %703 = vmatprep.subr.mxu0 0.0
    %704 = vmatpush1.msra.mxu0 %v670
    %705 = vmatprep.subr.mxu0 0.0
    %706 = vmatpush1.msra.mxu0 %v671
    %707 = vmatprep.subr.mxu0 0.0
    %708 = vmatpush1.msra.mxu0 %v672
    %709 = vmatprep.subr.mxu0 0.0
    %710 = vmatpush1.msra.mxu0 %v673
    %711 = vmatprep.subr.mxu0 0.0
    %712 = vmatpush1.msra.mxu0 %v674
    %713 = vmatprep.subr.mxu0 0.0
    %714 = vmatpush1.msra.mxu0 %v675
    %715 = vmatprep.subr.mxu0 0.0
    %716 = vmatpush1.msra.mxu0 0.0
    %717 = vmatprep.subr.mxu0 0.0
    %718 = vmatpush1.msra.mxu0 0.0
    %719 = vmatprep.subr.mxu0 0.0
    %720 = vmatpush1.msra.mxu0 0.0
    %721 = vmatprep.subr.mxu0 0.0
    %722 = vmatpush1.msra.mxu0 0.0
    %723 = vmatprep.subr.mxu0 0.0
    %724 = vmatpush1.msra.mxu0 0.0
    %725 = vmatprep.subr.mxu0 0.0
    %726 = vmatpush1.msra.mxu0 0.0
    %727 = vmatprep.subr.mxu0 0.0
    %728 = vmatpush1.msra.mxu0 0.0
    %729 = vmatprep.subr.mxu0 0.0
    %730 = vmatpush1.msra.mxu0 0.0
    %731 = vmatprep.subr.mxu0 0.0
    %732 = vmatpush1.msra.mxu0 0.0
    %733 = vmatprep.subr.mxu0 0.0
    %734 = vmatpush1.msra.mxu0 0.0
    %735 = vmatprep.subr.mxu0 0.0
    %736 = vmatpush1.msra.mxu0 0.0
    %737 = vmatprep.subr.mxu0 0.0
    %738 = vmatpush1.msra.mxu0 0.0
    %739 = vmatprep.subr.mxu0 0.0
    %740 = vmatpush1.msra.mxu0 0.0
    %741 = vmatprep.subr.mxu0 0.0
    %742 = vmatpush1.msra.mxu0 0.0
    %743 = vmatprep.subr.mxu0 0.0
    %744 = vmatpush1.msra.mxu0 0.0
    %745 = vmatprep.subr.mxu0 0.0
    %746 = vmatpush1.msra.mxu0 0.0
    %747 = vmatprep.mubr.f32.mxu0 0.0
    %748 = vmatmul.mubr.f32.gmra.mrb[0].mxu0 %v658
    %v749 = vpop.f32.mrb[0].mxu0
    %v750 = vadd.f32 %v681, %v749
    %v751 = vpop.f32.mrb[0].mxu0
    %752 = vmatprep.mubr.f32.mxu0 0.0
    %753 = vmatmul.mubr.f32.gmra.mrb[0].mxu0 %v659
    %v754 = vpop.f32.mrb[0].mxu0
    %v755 = vadd.f32 %v681, %v754
    %v756 = vpop.f32.mrb[0].mxu0
    %757 = vdwg.mxu0
    %758 = vst [vmem:[#allocation8] sm:$0xff] %v750
    %759 = vst [vmem:[#allocation8 + $0x8] sm:$0xff] %v755
    // Predicated region
    $region34: #{tpu_custom_call.1} parent=1 // pred_check
      _
    $region35: #{tpu_custom_call.1} parent=1 // pred_check_branch
      %761 = sbr.rel (0) target = $region37
    $region36: #{tpu_custom_call.1} parent=1 // pred_region
      %s763 = ssub.s32 256, 32
      %764 = vsyncadd [#allocation4], %s763
      %s765 = sshll.u32 [#allocation8], 4
      %s766 = int_to_ptr.vmem [resolvable:$true] %s765
      %771 = dma.vmem_to_hbm [thread:$0]  %s766, 32, %s5, [#allocation4], 32, 32, 2
    $region37: #{tpu_custom_call.1} parent=1 // pred_fallthru
      _
    // Predicated region
    $region38: #{tpu_custom_call.1} parent=1 // pred_check
      _
    $region39: #{tpu_custom_call.1} parent=1 // pred_check_branch
      %773 = sbr.rel (0) target = $region41
    $region40: #{tpu_custom_call.1} parent=1 // pred_region
      %774 = dma.done [#allocation4], 256
    $region41: #{tpu_custom_call.1} parent=1 // pred_fallthru
      _
    %775 = vsyncpa [#allocation3], 1
    %776 = vsyncpa [#allocation6], 1
    %777 = vsyncpa [#allocation4], 1

</llo_original>
